<compile_context>
chip_gen: v5e
topology: v5e:2x2
jax: 0.10.0
libtpu: 0.0.40
codegen_flags: <defaults>
</compile_context>

<pallas_src>
import jax
import jax.numpy as jnp
from jax.experimental import pallas as pl
from jax.experimental.pallas import tpu as pltpu

OUT_LANES = 128  # lane-dense output block; [0,0] = intersection count, [0,1] = union count


def _choose_tile(hw, c):
    """Pick a lane-tile size: ~1 MiB of logits per pipelined step, multiple of 128."""
    target = (1 << 20) // (4 * max(c, 1))
    tm = min(32 * 1024, max(1024, (target // 128) * 128))
    if hw <= tm:
        return hw  # one tile per image; block dim == full dim is always legal
    return tm


def _make_iou_kernel(hw, tm):
    mask_tail = (hw % tm) != 0

    def kernel(pred_ref, lbl_ref, out_ref, inter_acc, union_acc):
        # pred_ref: (C, TM) logits (native dtype); lbl_ref: (1, TM) float32 labels
        tile = pl.program_id(1)

        @pl.when(tile == 0)
        def _init():
            inter_acc[...] = jnp.zeros_like(inter_acc)
            union_acc[...] = jnp.zeros_like(union_acc)

        p = pred_ref[...]
        truth = lbl_ref[...]
        C = p.shape[0]

        # First-occurrence channel-argmax predicates (no index materialization).
        p0 = p[0:1, :]
        if C == 1:
            pred_ge1 = jnp.zeros(p0.shape, dtype=jnp.bool_)
            pred_eq1 = pred_ge1
        elif C == 2:
            pred_ge1 = p[1:2, :] > p0
            pred_eq1 = pred_ge1
        else:
            p1 = p[1:2, :]
            rest_max = jnp.max(p[2:, :], axis=0, keepdims=True)
            pred_ge1 = jnp.maximum(p1, rest_max) > p0      # argmax(p) >= 1
            pred_eq1 = (p1 > p0) & (p1 >= rest_max)        # argmax(p) == 1

        # For non-negative integer labels:
        #   truth * argmax == 1   <=>  (truth == 1) & (argmax == 1)
        #   truth + argmax >= 1   <=>  (truth >= 1) | (argmax >= 1)
        inter_mask = (truth == 1.0) & pred_eq1
        union_mask = (truth >= 1.0) | pred_ge1

        if mask_tail:
            lane = jax.lax.broadcasted_iota(jnp.int32, truth.shape, 1)
            valid = (tile * tm + lane) < hw
            inter_mask &= valid
            union_mask &= valid

        # Per-lane partial counts; cross-lane reduce deferred to the epilogue.
        inter_acc[...] += inter_mask.astype(jnp.int32)
        union_acc[...] += union_mask.astype(jnp.int32)

        @pl.when(tile == pl.num_programs(1) - 1)
        def _finalize():
            inter_cnt = jnp.sum(inter_acc[...])
            union_cnt = jnp.sum(union_acc[...])
            col = jax.lax.broadcasted_iota(jnp.int32, out_ref.shape, 1)
            out_ref[...] = jnp.where(
                col == 0, inter_cnt,
                jnp.where(col == 1, union_cnt, 0)).astype(jnp.int32)

    return kernel


def iou_forward(pred, lbl, *, tile_lanes=None):
    """pred: (N, C, H, W) logits (NCHW, like PyTorch). lbl: (N, H, W) non-negative
    integer labels.

    Returns (intersection_count, union_count) int32 scalars, matching IoU.forward's
    (torch.sum(intersect == 1), torch.sum(truth + pred >= 1)).
    """
    N, C, H, W = pred.shape
    HW = H * W

    # Free reshapes only — no transpose, no extra HBM copy of the logits.
    pred_r = pred.reshape(N, C, HW)
    lbl_r = lbl.reshape(N, 1, HW).astype(jnp.float32)   # .float() per the spec

    TM = tile_lanes if tile_lanes is not None else _choose_tile(HW, C)
    num_tiles = pl.cdiv(HW, TM)

    out = pl.pallas_call(
        _make_iou_kernel(HW, TM),
        out_shape=jax.ShapeDtypeStruct((N, 8, OUT_LANES), jnp.int32),
        grid=(N, num_tiles),
        in_specs=[
            pl.BlockSpec((pl.Squeezed(), C, TM), lambda n, i: (n, 0, i)),
            pl.BlockSpec((pl.Squeezed(), 1, TM), lambda n, i: (n, 0, i)),
        ],
        out_specs=pl.BlockSpec((pl.Squeezed(), 8, OUT_LANES), lambda n, i: (n, 0, 0)),
        scratch_shapes=[
            pltpu.VMEM((1, TM), jnp.int32),   # per-lane intersection partial counts
            pltpu.VMEM((1, TM), jnp.int32),   # per-lane union partial counts
        ],
        compiler_params=pltpu.CompilerParams(
            dimension_semantics=("parallel", "arbitrary"),
            vmem_limit_bytes=32 * 1024 * 1024,
        ),
    )(pred_r, lbl_r)

    inter = jnp.sum(out[:, 0, 0]).astype(jnp.int32)
    union = jnp.sum(out[:, 0, 1]).astype(jnp.int32)
    return inter, union


def _reference(pred, lbl):
    truth = lbl.reshape(-1).astype(jnp.float32)
    cls = jnp.argmax(pred, axis=1).reshape(-1).astype(jnp.float32)
    inter = jnp.sum((truth * cls) == 1.0).astype(jnp.int32)
    union = jnp.sum((truth + cls) >= 1.0).astype(jnp.int32)
    return inter, union


if __name__ == "__main__":
    key = jax.random.PRNGKey(0)
    k1, k2, k3, k4 = jax.random.split(key, 4)

    # Case 1: small binary-segmentation-like shape (single tile per image).
    N, C, H, W = 2, 4, 16, 16
    pred1 = jax.random.normal(k1, (N, C, H, W), dtype=jnp.float32)
    lbl1 = jax.random.randint(k2, (N, H, W), 0, 2, dtype=jnp.int32)
    inter1, union1 = iou_forward(pred1, lbl1)
    inter1 = jax.block_until_ready(inter1)
    union1 = jax.block_until_ready(union1)
    ref_i1, ref_u1 = _reference(pred1, lbl1)
    assert int(inter1) == int(ref_i1), (int(inter1), int(ref_i1))
    assert int(union1) == int(ref_u1), (int(union1), int(ref_u1))

    # Case 2: forces the multi-tile path with a masked partial last tile and
    # multi-class labels (values 0..2) to exercise the tiled accumulator.
    N2, C2, H2, W2 = 2, 3, 10, 20
    pred2 = jax.random.normal(k3, (N2, C2, H2, W2), dtype=jnp.float32)
    lbl2 = jax.random.randint(k4, (N2, H2, W2), 0, 3, dtype=jnp.int32)
    inter2, union2 = iou_forward(pred2, lbl2, tile_lanes=128)
    inter2 = jax.block_until_ready(inter2)
    union2 = jax.block_until_ready(union2)
    ref_i2, ref_u2 = _reference(pred2, lbl2)
    assert int(inter2) == int(ref_i2), (int(inter2), int(ref_i2))
    assert int(union2) == int(ref_u2), (int(union2), int(ref_u2))

    print("KERNEL_OK")
</pallas_src>

<mosaic_0001>
module attributes {stable_mosaic.version = 11 : i64} {
  func.func @kernel(%arg0: i32, %arg1: i32, %arg2: memref<1x4x256xf32, #tpu.memory_space<vmem>>, %arg3: memref<1x1x256xf32, #tpu.memory_space<vmem>>, %arg4: memref<1x8x128xi32, #tpu.memory_space<vmem>>, %arg5: memref<1x256xi32, #tpu.memory_space<vmem>>, %arg6: memref<1x256xi32, #tpu.memory_space<vmem>>) attributes {dimension_semantics = [#tpu.dimension_semantics<parallel>, #tpu.dimension_semantics<arbitrary>], iteration_bounds = array<i64: 2, 1>, scalar_prefetch = 0 : i64, scratch_operands = 2 : i64, tpu.core_type = #tpu.core_type<tc>, window_params = [{transform_indices = @transform_0, window_bounds = array<i64: 1, 4, 256>}, {transform_indices = @transform_1, window_bounds = array<i64: 1, 1, 256>}, {transform_indices = @transform_2, window_bounds = array<i64: 1, 8, 128>}]} {
    %c0_i32 = arith.constant 0 : i32
    %0 = arith.cmpi eq, %arg1, %c0_i32 : i32
    %1 = arith.extui %0 : i1 to i32
    %c0_i32_0 = arith.constant 0 : i32
    %2 = arith.cmpi ne, %1, %c0_i32_0 : i32
    scf.if %2 {
      %c0_i32_18 = arith.constant 0 : i32
      %34 = vector.broadcast %c0_i32_18 : i32 to vector<1x256xi32>
      %c0_19 = arith.constant 0 : index
      %c0_20 = arith.constant 0 : index
      %35 = vector.load %arg5[%c0_19, %c0_20] : memref<1x256xi32, #tpu.memory_space<vmem>>, vector<1x256xi32>
      tpu.vector_store %arg5[%c0_19, %c0_20], %34 {strides = array<i32>} : memref<1x256xi32, #tpu.memory_space<vmem>>, vector<1x256xi32>,
      %c0_i32_21 = arith.constant 0 : i32
      %36 = vector.broadcast %c0_i32_21 : i32 to vector<1x256xi32>
      %c0_22 = arith.constant 0 : index
      %c0_23 = arith.constant 0 : index
      %37 = vector.load %arg6[%c0_22, %c0_23] : memref<1x256xi32, #tpu.memory_space<vmem>>, vector<1x256xi32>
      tpu.vector_store %arg6[%c0_22, %c0_23], %36 {strides = array<i32>} : memref<1x256xi32, #tpu.memory_space<vmem>>, vector<1x256xi32>,
    } else {
    }
    %c0 = arith.constant 0 : index
    %c0_1 = arith.constant 0 : index
    %c0_2 = arith.constant 0 : index
    %3 = vector.load %arg2[%c0, %c0_1, %c0_2] : memref<1x4x256xf32, #tpu.memory_space<vmem>>, vector<1x4x256xf32>
    %4 = vector.shape_cast %3 : vector<1x4x256xf32> to vector<4x256xf32>
    %c0_3 = arith.constant 0 : index
    %c0_4 = arith.constant 0 : index
    %c0_5 = arith.constant 0 : index
    %5 = vector.load %arg3[%c0_3, %c0_4, %c0_5] : memref<1x1x256xf32, #tpu.memory_space<vmem>>, vector<1x1x256xf32>
    %6 = vector.shape_cast %5 : vector<1x1x256xf32> to vector<1x256xf32>
    %7 = vector.extract_strided_slice %4 {offsets = [0, 0], sizes = [1, 256], strides = [1, 1]} : vector<4x256xf32> to vector<1x256xf32>
    %8 = vector.extract_strided_slice %4 {offsets = [1, 0], sizes = [1, 256], strides = [1, 1]} : vector<4x256xf32> to vector<1x256xf32>
    %9 = vector.extract_strided_slice %4 {offsets = [2, 0], sizes = [2, 256], strides = [1, 1]} : vector<4x256xf32> to vector<2x256xf32>
    %cst = arith.constant dense<0xFF800000> : vector<256xf32>
    %10 = vector.multi_reduction <maximumf>, %9, %cst [0] : vector<2x256xf32> to vector<256xf32>
    %11 = vector.shape_cast %10 : vector<256xf32> to vector<1x256xf32>
    %12 = arith.maximumf %8, %11 : vector<1x256xf32>
    %13 = arith.cmpf ogt, %12, %7 : vector<1x256xf32>
    %14 = arith.cmpf ogt, %8, %7 : vector<1x256xf32>
    %15 = arith.cmpf oge, %8, %11 : vector<1x256xf32>
    %16 = arith.andi %14, %15 : vector<1x256xi1>
    %cst_6 = arith.constant 1.000000e+00 : f32
    %17 = vector.broadcast %cst_6 : f32 to vector<1x256xf32>
    %18 = arith.cmpf oeq, %6, %17 : vector<1x256xf32>
    %19 = arith.andi %18, %16 : vector<1x256xi1>
    %cst_7 = arith.constant 1.000000e+00 : f32
    %20 = vector.broadcast %cst_7 : f32 to vector<1x256xf32>
    %21 = arith.cmpf oge, %6, %20 : vector<1x256xf32>
    %22 = arith.ori %21, %13 : vector<1x256xi1>
    %c0_8 = arith.constant 0 : index
    %c0_9 = arith.constant 0 : index
    %23 = vector.load %arg5[%c0_8, %c0_9] : memref<1x256xi32, #tpu.memory_space<vmem>>, vector<1x256xi32>
    %24 = arith.extui %19 : vector<1x256xi1> to vector<1x256xi32>
    %25 = arith.addi %23, %24 : vector<1x256xi32>
    %c0_10 = arith.constant 0 : index
    %c0_11 = arith.constant 0 : index
    %26 = vector.load %arg5[%c0_10, %c0_11] : memref<1x256xi32, #tpu.memory_space<vmem>>, vector<1x256xi32>
    tpu.vector_store %arg5[%c0_10, %c0_11], %25 {strides = array<i32>} : memref<1x256xi32, #tpu.memory_space<vmem>>, vector<1x256xi32>,
    %c0_12 = arith.constant 0 : index
    %c0_13 = arith.constant 0 : index
    %27 = vector.load %arg6[%c0_12, %c0_13] : memref<1x256xi32, #tpu.memory_space<vmem>>, vector<1x256xi32>
    %28 = arith.extui %22 : vector<1x256xi1> to vector<1x256xi32>
    %29 = arith.addi %27, %28 : vector<1x256xi32>
    %c0_14 = arith.constant 0 : index
    %c0_15 = arith.constant 0 : index
    %30 = vector.load %arg6[%c0_14, %c0_15] : memref<1x256xi32, #tpu.memory_space<vmem>>, vector<1x256xi32>
    tpu.vector_store %arg6[%c0_14, %c0_15], %29 {strides = array<i32>} : memref<1x256xi32, #tpu.memory_space<vmem>>, vector<1x256xi32>,
    %c0_i32_16 = arith.constant 0 : i32
    %31 = arith.cmpi eq, %arg1, %c0_i32_16 : i32
    %32 = arith.extui %31 : i1 to i32
    %c0_i32_17 = arith.constant 0 : i32
    %33 = arith.cmpi ne, %32, %c0_i32_17 : i32
    scf.if %33 {
      %c0_18 = arith.constant 0 : index
      %c0_19 = arith.constant 0 : index
      %34 = vector.load %arg5[%c0_18, %c0_19] : memref<1x256xi32, #tpu.memory_space<vmem>>, vector<1x256xi32>
      %35 = vector.shape_cast %34 : vector<1x256xi32> to vector<1x1x256xi32>
      %cst_20 = arith.constant dense<0> : vector<1xi32>
      %36 = vector.multi_reduction <add>, %35, %cst_20 [1, 2] : vector<1x1x256xi32> to vector<1xi32>
      %37 = vector.shape_cast %36 : vector<1xi32> to vector<1x1x1xi32>
      %38 = vector.extract %37[0, 0, 0] : i32 from vector<1x1x1xi32>
      %c0_21 = arith.constant 0 : index
      %c0_22 = arith.constant 0 : index
      %39 = vector.load %arg6[%c0_21, %c0_22] : memref<1x256xi32, #tpu.memory_space<vmem>>, vector<1x256xi32>
      %40 = vector.shape_cast %39 : vector<1x256xi32> to vector<1x1x256xi32>
      %cst_23 = arith.constant dense<0> : vector<1xi32>
      %41 = vector.multi_reduction <add>, %40, %cst_23 [1, 2] : vector<1x1x256xi32> to vector<1xi32>
      %42 = vector.shape_cast %41 : vector<1xi32> to vector<1x1x1xi32>
      %43 = vector.extract %42[0, 0, 0] : i32 from vector<1x1x1xi32>
      %44 = tpu.iota {dimensions = array<i32: 1>} : vector<8x128xi32>
      %c0_i32_24 = arith.constant 0 : i32
      %45 = vector.broadcast %c0_i32_24 : i32 to vector<8x128xi32>
      %46 = arith.cmpi eq, %44, %45 : vector<8x128xi32>
      %c1_i32 = arith.constant 1 : i32
      %47 = vector.broadcast %c1_i32 : i32 to vector<8x128xi32>
      %48 = arith.cmpi eq, %44, %47 : vector<8x128xi32>
      %c0_i32_25 = arith.constant 0 : i32
      %49 = vector.broadcast %43 : i32 to vector<8x128xi32>
      %50 = vector.broadcast %c0_i32_25 : i32 to vector<8x128xi32>
      %51 = arith.select %48, %49, %50 : vector<8x128xi1>, vector<8x128xi32>
      %52 = vector.broadcast %38 : i32 to vector<8x128xi32>
      %53 = arith.select %46, %52, %51 : vector<8x128xi1>, vector<8x128xi32>
      %c0_26 = arith.constant 0 : index
      %c0_27 = arith.constant 0 : index
      %c0_28 = arith.constant 0 : index
      %54 = vector.load %arg4[%c0_26, %c0_27, %c0_28] : memref<1x8x128xi32, #tpu.memory_space<vmem>>, vector<1x8x128xi32>
      %55 = vector.shape_cast %54 : vector<1x8x128xi32> to vector<8x128xi32>
      %56 = vector.shape_cast %53 : vector<8x128xi32> to vector<1x8x128xi32>
      tpu.vector_store %arg4[%c0_26, %c0_27, %c0_28], %56 {strides = array<i32>} : memref<1x8x128xi32, #tpu.memory_space<vmem>>, vector<1x8x128xi32>,
    } else {
    }
    return
  }
  func.func @transform_0(%arg0: i32, %arg1: i32) -> (i32, i32, i32) {
    %c0_i32 = arith.constant 0 : i32
    %c0_i32_0 = arith.constant 0 : i32
    return %arg0, %c0_i32, %arg1 : i32, i32, i32
  }
  func.func @transform_1(%arg0: i32, %arg1: i32) -> (i32, i32, i32) {
    %c0_i32 = arith.constant 0 : i32
    %c0_i32_0 = arith.constant 0 : i32
    return %arg0, %c0_i32, %arg1 : i32, i32, i32
  }
  func.func @transform_2(%arg0: i32, %arg1: i32) -> (i32, i32, i32) {
    %c0_i32 = arith.constant 0 : i32
    %c0_i32_0 = arith.constant 0 : i32
    %c0_i32_1 = arith.constant 0 : i32
    return %arg0, %c0_i32, %c0_i32_0 : i32, i32, i32
  }
}

</mosaic_0001>

<llo_original>
// kernel: tpu_custom_call.1
$region0: #{tpu_custom_call.1}
  #allocation0 [shape = 'u32[]', space=smem, size = 0x4, offset = 0x4, fixed_abs, tag = 'smem constant byte address 0x4 - core index']
  #allocation1 [shape = 'u32[72,128]{1,0:T(1,128)}', space=vmem, size = 0x9000, scoped, tag = 'internal scratch']
  #allocation2 [shape = 's32[1,256]{1,0:T(1,128)}', space=vmem, size = 0x400, scoped, tag = 'scratch operand']
  #allocation3 [shape = 's32[1,256]{1,0:T(1,128)}', space=vmem, size = 0x400, scoped, tag = 'scratch operand']
  %s0 = inlined_call_operand.hbm [shape: f32[2,4,256], index: 0, kind: input, shape index: {}]
  %s1 = inlined_call_operand.hbm [shape: f32[2,1,256], index: 1, kind: input, shape index: {}]
  %s2 = inlined_call_operand.hbm [shape: s32[2,8,128], index: 2, kind: output, shape index: {}]
  %s3 = sld [smem:[#allocation0]]
  $region57: #{tpu_custom_call.1} parent=0
    _
  %s5 = ssub.s32 1, %s3
  %s6 = scalar_select 0, %s5, %s3
  $region1: #{tpu_custom_call.1} parent=0
    #allocation4 [shape = 'u8[8192]{0}', space=vmem, size = 0x2000, scoped, tag = 'input window, operand 0']
    #allocation5 [shape = 's32[2]{0}', space=sflag, size = 0x8, scoped, tag = 'scoped memory for tpu_custom_call.1']
    #allocation6 [shape = 's32[2]{0}', space=sflag, size = 0x8, scoped, tag = 'scoped memory for tpu_custom_call.1']
    #allocation7 [shape = 'u8[2048]{0}', space=vmem, size = 0x800, scoped, tag = 'input window, operand 1']
    #allocation8 [shape = 's32[2]{0}', space=sflag, size = 0x8, scoped, tag = 'scoped memory for tpu_custom_call.1']
    #allocation9 [shape = 'u8[8192]{0}', space=vmem, size = 0x2000, scoped, tag = 'output window, operand 0']
    %7 = vsyncpa [#allocation5], 0
    %s8 = scalar_lea.sflag [#allocation5], 1
    %9 = vsyncpa %s8, 0
    %10 = vsyncpa [#allocation8], 0
    %s11 = scalar_lea.sflag [#allocation8], 1
    %12 = vsyncpa %s11, 0
    %13 = vsyncpa [#allocation6], 0
    %s14 = scalar_lea.sflag [#allocation6], 1
    %15 = vsyncpa %s14, 0
    loop: start=0, step=1, limit=4
    $region2: #{tpu_custom_call.1} parent=1 // loop_pre_header
      _
    $region3: #{tpu_custom_call.1} parent=1 // loop_header
      %s17 = sphi 0, %s21
      %p18 = scmp.ge.s32.totalorder %s17, 4
      %s24 = sphi 0, %s36
      %s25 = sphi 0, %s32
      %s26 = sphi 0, %s24
      %s27 = sphi 0, %s25
      %s28 = sphi 0, %s26
      %s29 = sphi 0, %s27
      %s41 = sphi 0, %s43
      %s44 = sphi 0, %s41
      %s45 = sphi 0, %s44
      %s61 = sphi 0, %s45
      %s69 = sphi 0, %s71
      %s72 = sphi 0, %s69
      %s73 = sphi 0, %s72
      %s89 = sphi 0, %s73
      %s95 = sphi 0, %s97
      %s98 = sphi 0, %s95
      %s99 = sphi 0, %s98
      %s115 = sphi 0, %s99
    $region4: #{tpu_custom_call.1} parent=1 // loop_header_branch
      %20 = sbr.rel (%p18) target = $region8
    $region5: #{tpu_custom_call.1} parent=1 // loop_body
      %s22 = ssub.s32 %s17, 1
      %s23 = ssub.s32 %s17, 2
      %s30 = sadd.s32 1, %s25
      %p31 = scmp.ge.s32.totalorder %s30, 1
      %s32 = scalar_select %p31, 0, %s30
      %s33 = sadd.s32 1, %s24
      %s34 = scalar_select %p31, %s33, %s24
      %p35 = scmp.ge.s32.totalorder %s34, 2
      %s36 = scalar_select %p35, 0, %s34
      %s37 = ssub.s32 %s24, %s36
      %s38 = ssub.s32 %s25, %s32
      %s39 = sor.u32 %s37, %s38
      %p40 = scmp.eq.s32.totalorder %s39, 0
      %s42 = sadd.s32 %s41, 1
      %s43 = scalar_select %p40, %s41, %s42
      %p46 = pneg %p40
      %p47 = scmp.eq.s32.totalorder %s17, 1
      %p48 = por %p46, %p47
      %p49 = scmp.ne.s32.totalorder %s41, %s44
      %p50 = scmp.eq.s32.totalorder %s17, 0
      %p51 = por %p49, %p50
      %p52 = scmp.ne.s32.totalorder %s41, %s44
      %p53 = scmp.eq.s32.totalorder %s22, 1
      %p54 = por %p52, %p53
      %p55 = scmp.ne.s32.totalorder %s44, %s45
      %p56 = scmp.eq.s32.totalorder %s22, 0
      %p57 = por %p55, %p56
      %p58 = scmp.ne.s32.totalorder %s44, %s45
      %p59 = scmp.eq.s32.totalorder %s23, 1
      %p60 = por %p58, %p59
      %p62 = scmp.ne.s32.totalorder %s45, %s61
      %p63 = scmp.eq.s32.totalorder %s23, 0
      %p64 = por %p62, %p63
      %s65 = ssub.s32 %s24, %s36
      %s66 = ssub.s32 %s25, %s32
      %s67 = sor.u32 %s65, %s66
      %p68 = scmp.eq.s32.totalorder %s67, 0
      %s70 = sadd.s32 %s69, 1
      %s71 = scalar_select %p68, %s69, %s70
      %p74 = pneg %p68
      %p75 = scmp.eq.s32.totalorder %s17, 1
      %p76 = por %p74, %p75
      %p77 = scmp.ne.s32.totalorder %s69, %s72
      %p78 = scmp.eq.s32.totalorder %s17, 0
      %p79 = por %p77, %p78
      %p80 = scmp.ne.s32.totalorder %s69, %s72
      %p81 = scmp.eq.s32.totalorder %s22, 1
      %p82 = por %p80, %p81
      %p83 = scmp.ne.s32.totalorder %s72, %s73
      %p84 = scmp.eq.s32.totalorder %s22, 0
      %p85 = por %p83, %p84
      %p86 = scmp.ne.s32.totalorder %s72, %s73
      %p87 = scmp.eq.s32.totalorder %s23, 1
      %p88 = por %p86, %p87
      %p90 = scmp.ne.s32.totalorder %s73, %s89
      %p91 = scmp.eq.s32.totalorder %s23, 0
      %p92 = por %p90, %p91
      %s93 = ssub.s32 %s24, %s36
      %p94 = scmp.eq.s32.totalorder %s93, 0
      %s96 = sadd.s32 %s95, 1
      %s97 = scalar_select %p94, %s95, %s96
      %p100 = pneg %p94
      %p101 = scmp.eq.s32.totalorder %s17, 1
      %p102 = por %p100, %p101
      %p103 = scmp.ne.s32.totalorder %s95, %s98
      %p104 = scmp.eq.s32.totalorder %s17, 0
      %p105 = por %p103, %p104
      %p106 = scmp.ne.s32.totalorder %s95, %s98
      %p107 = scmp.eq.s32.totalorder %s22, 1
      %p108 = por %p106, %p107
      %p109 = scmp.ne.s32.totalorder %s98, %s99
      %p110 = scmp.eq.s32.totalorder %s22, 0
      %p111 = por %p109, %p110
      %p112 = scmp.ne.s32.totalorder %s98, %s99
      %p113 = scmp.eq.s32.totalorder %s23, 1
      %p114 = por %p112, %p113
      %p116 = scmp.ne.s32.totalorder %s99, %s115
      %p117 = scmp.eq.s32.totalorder %s23, 0
      %p118 = por %p116, %p117
      %p119 = scmp.le.s32.totalorder 1, %s17
      %p120 = scmp.lt.s32.totalorder %s17, 3
      %p121 = pnand %p119, %p120
      %p122 = pneg %p121
      // Predicated region
      $region9: #{tpu_custom_call.1} parent=5 // pred_check
        _
      $region10: #{tpu_custom_call.1} parent=5 // pred_check_branch
        %124 = sbr.rel (%p121) target = $region12
      $region11: #{tpu_custom_call.1} parent=5 // pred_region
        %s125 = ssub.s32 %s17, 1
      $region12: #{tpu_custom_call.1} parent=5 // pred_fallthru
        _
      %p126 = scmp.lt.s32.totalorder %s17, 2
      // Predicated region
      $region13: #{tpu_custom_call.1} parent=5 // pred_check
        %p127 = pneg %p126
      $region14: #{tpu_custom_call.1} parent=5 // pred_check_branch
        %129 = sbr.rel (%p127) target = $region16
      $region15: #{tpu_custom_call.1} parent=5 // pred_region
        // Predicated region
        $region17: #{tpu_custom_call.1} parent=15 // pred_check
          %p130 = pneg %p51
        $region18: #{tpu_custom_call.1} parent=15 // pred_check_branch
          %132 = sbr.rel (%p130) target = $region20
        $region19: #{tpu_custom_call.1} parent=15 // pred_region
          %s133 = sand.u32 %s41, 1
          %s134 = scalar_lea.sflag [#allocation5], %s133
          %s135 = sand.u32 %s41, 1
          %s136 = smul.addr %s135, 8
          %s137 = scalar_lea.vmem [#allocation4], %s136
          %s138 = smul.u32 2, %s25
          %140 = vsyncadd %s134, 0
          %s141 = smul.addr %s24, 2
          %s142 = sadd.s32 %s138, %s141
          %s143 = smul.addr %s142, 4
          %s144 = scalar_lea.hbm %s0, %s143
          %s146 = sshll.u32 %s144, 4
          %s147 = int_to_ptr.hbm [resolvable:$true] %s146
          %s148 = sshll.u32 %s137, 4
          %s149 = int_to_ptr.vmem [resolvable:$true] %s148
          %151 = dma.hbm_to_vmem [thread:$0]  %s147, 128, %s149, %s134
        $region20: #{tpu_custom_call.1} parent=15 // pred_fallthru
          _
        // Predicated region
        $region21: #{tpu_custom_call.1} parent=15 // pred_check
          %p152 = pneg %p79
        $region22: #{tpu_custom_call.1} parent=15 // pred_check_branch
          %154 = sbr.rel (%p152) target = $region24
        $region23: #{tpu_custom_call.1} parent=15 // pred_region
          %s155 = sand.u32 %s69, 1
          %s156 = scalar_lea.sflag [#allocation8], %s155
          %s157 = sand.u32 %s69, 1
          %s158 = smul.addr %s157, 2
          %s159 = scalar_lea.vmem [#allocation7], %s158
          %s160 = smul.u32 2, %s25
          %162 = vsyncadd %s156, 0
          %s163 = smul.addr %s24, 2
          %s164 = sadd.s32 %s160, %s163
          %s165 = scalar_lea.hbm %s1, %s164
          %s167 = sshll.u32 %s165, 4
          %s168 = int_to_ptr.hbm [resolvable:$true] %s167
          %s169 = sshll.u32 %s159, 4
          %s170 = int_to_ptr.vmem [resolvable:$true] %s169
          %172 = dma.hbm_to_vmem [thread:$0]  %s168, 32, %s170, %s156
        $region24: #{tpu_custom_call.1} parent=15 // pred_fallthru
          _
      $region16: #{tpu_custom_call.1} parent=5 // pred_fallthru
        _
      %p173 = scmp.le.s32.totalorder 1, %s17
      %p174 = scmp.lt.s32.totalorder %s17, 3
      %p175 = pnand %p173, %p174
      %p176 = pneg %p175
      // Predicated region
      $region25: #{tpu_custom_call.1} parent=5 // pred_check
        _
      $region26: #{tpu_custom_call.1} parent=5 // pred_check_branch
        %178 = sbr.rel (%p175) target = $region28
      $region27: #{tpu_custom_call.1} parent=5 // pred_region
        %s179 = ssub.s32 %s17, 1
        %s180 = sand.u32 %s44, 1
        %s181 = scalar_lea.sflag [#allocation5], %s180
        %s182 = sand.u32 %s44, 1
        %s183 = smul.addr %s182, 8
        %s184 = scalar_lea.vmem [#allocation4], %s183
        // Predicated region
        $region29: #{tpu_custom_call.1} parent=27 // pred_check
          %p185 = pneg %p57
        $region30: #{tpu_custom_call.1} parent=27 // pred_check_branch
          %187 = sbr.rel (%p185) target = $region32
        $region31: #{tpu_custom_call.1} parent=27 // pred_region
          %189 = dma.done %s181, 128
        $region32: #{tpu_custom_call.1} parent=27 // pred_fallthru
          _
        %s190 = sand.u32 %s72, 1
        %s191 = scalar_lea.sflag [#allocation8], %s190
        %s192 = sand.u32 %s72, 1
        %s193 = smul.addr %s192, 2
        %s194 = scalar_lea.vmem [#allocation7], %s193
        // Predicated region
        $region33: #{tpu_custom_call.1} parent=27 // pred_check
          %p195 = pneg %p85
        $region34: #{tpu_custom_call.1} parent=27 // pred_check_branch
          %197 = sbr.rel (%p195) target = $region36
        $region35: #{tpu_custom_call.1} parent=27 // pred_region
          %199 = dma.done %s191, 32
        $region36: #{tpu_custom_call.1} parent=27 // pred_fallthru
          _
        %s200 = sand.u32 %s44, 1
        %s201 = scalar_lea.sflag [#allocation5], %s200
        %s202 = sand.u32 %s44, 1
        %s203 = smul.addr %s202, 8
        %s204 = scalar_lea.vmem [#allocation4], %s203
        %p205 = pneg %p57
        %p206 = pneg %p54
        %s207 = sand.u32 %s72, 1
        %s208 = scalar_lea.sflag [#allocation8], %s207
        %s209 = sand.u32 %s72, 1
        %s210 = smul.addr %s209, 2
        %s211 = scalar_lea.vmem [#allocation7], %s210
        %p212 = pneg %p85
        %p213 = pneg %p82
        %p214 = pneg %p111
        %p215 = pneg %p108
        %s216 = sand.u32 %s98, 1
        %s217 = scalar_lea.sflag [#allocation6], %s216
        %s218 = sand.u32 %s98, 1
        %s219 = smul.addr %s218, 8
        %s220 = scalar_lea.vmem [#allocation9], %s219
        %s221 = smul.u32 2, %s27
        %s222 = smul.u32 2, %s27
        %p223 = scmp.eq.s32.totalorder %s27, 0
        // Predicated region
        $region37: #{tpu_custom_call.1} parent=27 // pred_check
          %p224 = pneg %p223
        $region38: #{tpu_custom_call.1} parent=27 // pred_check_branch
          %226 = sbr.rel (%p224) target = $region40
        $region39: #{tpu_custom_call.1} parent=27 // pred_region
          %v227 = vlaneseq
          %vm228 = vcmp.ge.s32.totalorder %v227, 0
          %vm229 = vcmp.lt.s32.totalorder %v227, 256
          %vm230 = vmand %vm228, %vm229
          %231 = vst.msk [vmem:[#allocation2] sm:$0x3] %vm230, 0
          %232 = vst.msk [vmem:[#allocation3] sm:$0x3] %vm230, 0
        $region40: #{tpu_custom_call.1} parent=27 // pred_fallthru
          _
        %v233 = vld [vmem:[%s184] sm:$0xff]
        %v234 = vld [vmem:[%s194] sm:$0x3]
        %236 = vst [vmem:[#allocation1] ss:$2 sm:$0xff] %v233
        %v237 = vld.sshfl [vmem:[#allocation1] sm:$0xff pattern:$0x75316420]
        %v238 = vld.sshfl [vmem:[#allocation1 + $0x8] sm:$0xff pattern:$0x75316420]
        %vm241 = vcmask 1043458
        %v242 = vsel %vm241, %v237, -inf
        %v243 = vrot.slane %v242, 4
        %v244 = vmax.f32 %v242, %v243
        %v245 = vrot.slane %v244, 2
        %v246 = vmax.f32 %v244, %v245
        %v247 = vrot.slane %v246, 1
        %v248 = vmax.f32 %v246, %v247
        %v249 = vsel %vm241, %v238, -inf
        %v250 = vrot.slane %v249, 4
        %v251 = vmax.f32 %v249, %v250
        %v252 = vrot.slane %v251, 2
        %v253 = vmax.f32 %v251, %v252
        %v254 = vrot.slane %v253, 1
        %v255 = vmax.f32 %v253, %v254
        %v258 = vrot.slane %v255, 4
        %vm259 = vcmask 1043456
        %v260 = vsel %vm259, %v248, %v258
        %v261 = vrot.slane %v260, 7
        %v263 = vmax.f32 %v233, %v261
        %v264 = vrot.slane %v233, 7
        %vm266 = vcmp.gt.f32.partialorder %v263, %v264
        %vm267 = vcmp.gt.f32.partialorder %v233, %v264
        %vm268 = vcmp.ge.f32.partialorder %v233, %v261
        %vm269 = vmand %vm267, %vm268
        %vm270 = vcmp.eq.f32.partialorder %v234, 1.0
        %v271 = vsel %vm269, 1, 0
        %272 = vst [vmem:[#allocation1] sm:$0xff] %v271
        %s273 = scalar_lea.vmem [#allocation1], 1
        %v274 = vld [vmem:[%s273] ss:$4 sm:$0xff]
        %vm275 = vcmp.ne.s32.totalorder %v274, 0
        %vm276 = vmand %vm270, %vm275
        %vm277 = vcmp.ge.f32.partialorder %v234, 1.0
        %v278 = vsel %vm266, 1, 0
        %279 = vst [vmem:[#allocation1] sm:$0xff] %v278
        %s280 = scalar_lea.vmem [#allocation1], 1
        %v281 = vld [vmem:[%s280] ss:$4 sm:$0xff]
        %vm282 = vcmp.ne.s32.totalorder %v281, 0
        %vm283 = vmor %vm277, %vm282
        %v284 = vld [vmem:[#allocation2] sm:$0x3]
        %v285 = vsel %vm276, 1, 0
        %v286 = vadd.s32 %v284, %v285
        %v287 = vlaneseq
        %vm288 = vcmp.ge.s32.totalorder %v287, 0
        %vm289 = vcmp.lt.s32.totalorder %v287, 256
        %vm290 = vmand %vm288, %vm289
        %291 = vst.msk [vmem:[#allocation2] sm:$0x3] %vm290, %v286
        %v292 = vld [vmem:[#allocation3] sm:$0x3]
        %v293 = vsel %vm283, 1, 0
        %v294 = vadd.s32 %v292, %v293
        %295 = vst.msk [vmem:[#allocation3] sm:$0x3] %vm290, %v294
        // Predicated region
        $region41: #{tpu_custom_call.1} parent=27 // pred_check
          %p296 = pneg %p223
        $region42: #{tpu_custom_call.1} parent=27 // pred_check_branch
          %298 = sbr.rel (%p296) target = $region44
        $region43: #{tpu_custom_call.1} parent=27 // pred_region
          %v299 = vld [vmem:[#allocation2] sm:$0x3]
          %v300 = vperm.slane %v299, 0
          %v301 = vperm.slane %v299, 1
          %vm302 = vcmask 1040384
          %v303 = vsel %vm302, %v300, 0
          %v304 = vsel %vm302, %v301, 0
          %v305 = vadd.s32 %v303, %v304
          %v306 = vand.u32 %v305, 65535
          %v307 = vshrl.u32 %v305, 16
          %v308 = vcvt.s32.f32 %v306
          %v309 = vcvt.s32.f32 %v307
          %310 = vadd.xlane.f32.xlu0 %v308
          %v311 = vpop.xlane.xlu0 %310
          %312 = vadd.xlane.f32.xlu0 %v309
          %v313 = vpop.xlane.xlu0 %312
          %v314 = vcvt.f32.s32 %v311
          %v315 = vcvt.f32.s32 %v313
          %v316 = vshll.u32 %v315, 16
          %v317 = vadd.s32 %v316, %v314
          %v318 = vrot.slane %v317, 4
          %v319 = vadd.s32 %v317, %v318
          %v320 = vrot.slane %v319, 2
          %v321 = vadd.s32 %v319, %v320
          %v322 = vrot.slane %v321, 1
          %v323 = vadd.s32 %v321, %v322
          %s324 = vtos %v323
          %v325 = vld [vmem:[#allocation3] sm:$0x3]
          %v326 = vperm.slane %v325, 0
          %v327 = vperm.slane %v325, 1
          %v328 = vsel %vm302, %v326, 0
          %v329 = vsel %vm302, %v327, 0
          %v330 = vadd.s32 %v328, %v329
          %v331 = vand.u32 %v330, 65535
          %v332 = vshrl.u32 %v330, 16
          %v333 = vcvt.s32.f32 %v331
          %v334 = vcvt.s32.f32 %v332
          %335 = vadd.xlane.f32.xlu0 %v333
          %v336 = vpop.xlane.xlu0 %335
          %337 = vadd.xlane.f32.xlu0 %v334
          %v338 = vpop.xlane.xlu0 %337
          %v339 = vcvt.f32.s32 %v336
          %v340 = vcvt.f32.s32 %v338
          %v341 = vshll.u32 %v340, 16
          %v342 = vadd.s32 %v341, %v339
          %v343 = vrot.slane %v342, 4
          %v344 = vadd.s32 %v342, %v343
          %v345 = vrot.slane %v344, 2
          %v346 = vadd.s32 %v344, %v345
          %v347 = vrot.slane %v346, 1
          %v348 = vadd.s32 %v346, %v347
          %s349 = vtos %v348
          %v350 = vlaneseq
          %v351 = vand.u32 %v350, 127
          %vm352 = vcmp.eq.s32.totalorder %v351, 0
          %vm353 = vcmp.eq.s32.totalorder %v351, 1
          %v354 = vstv %s349
          %v355 = vsel %vm353, %v354, 0
          %v356 = vstv %s324
          %v357 = vsel %vm352, %v356, %v355
          %358 = vst [vmem:[%s220] sm:$0xff] %v357
        $region44: #{tpu_custom_call.1} parent=27 // pred_fallthru
          _
        %s359 = sand.u32 %s98, 1
        %s360 = scalar_lea.sflag [#allocation6], %s359
        %s361 = sand.u32 %s98, 1
        %s362 = smul.addr %s361, 8
        %s363 = scalar_lea.vmem [#allocation9], %s362
        // Predicated region
        $region45: #{tpu_custom_call.1} parent=27 // pred_check
          %p364 = pneg %p108
        $region46: #{tpu_custom_call.1} parent=27 // pred_check_branch
          %366 = sbr.rel (%p364) target = $region48
        $region47: #{tpu_custom_call.1} parent=27 // pred_region
          %368 = vsyncadd %s360, 0
          %s369 = smul.addr %s26, 8
          %s370 = scalar_lea.hbm %s2, %s369
          %s372 = sshll.u32 %s363, 4
          %s373 = int_to_ptr.vmem [resolvable:$true] %s372
          %s374 = sshll.u32 %s370, 4
          %s375 = int_to_ptr.hbm [resolvable:$true] %s374
          %377 = dma.vmem_to_hbm [thread:$0]  %s373, 128, %s375, %s360
        $region48: #{tpu_custom_call.1} parent=27 // pred_fallthru
          _
      $region28: #{tpu_custom_call.1} parent=5 // pred_fallthru
        _
      %p378 = scmp.le.s32.totalorder 2, %s17
      // Predicated region
      $region49: #{tpu_custom_call.1} parent=5 // pred_check
        %p379 = pneg %p378
      $region50: #{tpu_custom_call.1} parent=5 // pred_check_branch
        %381 = sbr.rel (%p379) target = $region52
      $region51: #{tpu_custom_call.1} parent=5 // pred_region
        %s382 = ssub.s32 %s17, 2
        // Predicated region
        $region53: #{tpu_custom_call.1} parent=51 // pred_check
          %p383 = pneg %p114
        $region54: #{tpu_custom_call.1} parent=51 // pred_check_branch
          %385 = sbr.rel (%p383) target = $region56
        $region55: #{tpu_custom_call.1} parent=51 // pred_region
          %s386 = sand.u32 %s99, 1
          %s387 = scalar_lea.sflag [#allocation6], %s386
          %s388 = sand.u32 %s99, 1
          %s389 = smul.addr %s388, 8
          %s390 = scalar_lea.vmem [#allocation9], %s389
          %392 = dma.done %s387, 128
        $region56: #{tpu_custom_call.1} parent=51 // pred_fallthru
          _
      $region52: #{tpu_custom_call.1} parent=5 // pred_fallthru
        _
    $region6: #{tpu_custom_call.1} parent=1 // loop_footer
      %s21 = sadd.s32 1, %s17
    $region7: #{tpu_custom_call.1} parent=1 // loop_footer_branch
      %16 = sbr.rel target = $region3
    $region8: #{tpu_custom_call.1} parent=1 // loop_exit
      _
    %393 = vsyncpa [#allocation5], 1
    %s394 = scalar_lea.sflag [#allocation5], 1
    %395 = vsyncpa %s394, 1
    %396 = vsyncpa [#allocation8], 1
    %s397 = scalar_lea.sflag [#allocation8], 1
    %398 = vsyncpa %s397, 1
    %399 = vsyncpa [#allocation6], 1
    %s400 = scalar_lea.sflag [#allocation6], 1
    %401 = vsyncpa %s400, 1

</llo_original>
